<compile_context>
chip_gen: v5e
topology: v5e:2x2
jax: 0.10.0
libtpu: 0.0.40
codegen_flags: <defaults>
</compile_context>

<pallas_src>
from functools import partial

import jax
import jax.numpy as jnp
import numpy as np
from jax.experimental import pallas as pl
from jax.experimental.pallas import tpu as pltpu


def resblock_kernel(x_ref, wc_ref, bc_ref, hh_ref, ww_ref, o_ref, *,
                    H, W, Cp, Cout, bblk):
    """One batch chunk (= bblk images) per grid step, ONE fused matmul.

    x_ref  : (bblk, Cp, H*W)   lane-dense NCHW-flattened input chunk (no spatial pad)
    wc_ref : (2*Cout, 9*Cp)    fused weights [block | shortcut], BN scales folded
    bc_ref : (2*Cout, 1)       fused folded-BN biases (f32)
    hh_ref : (1, bblk*H*W)     per-lane row index h(p)  (int32, period H*W)
    ww_ref : (1, bblk*H*W)     per-lane col index w(p)  (int32, period H*W)
    o_ref  : (bblk, Cout, H*W) lane-dense output chunk
    """
    HW = H * W
    N = bblk * HW

    # Assemble the chunk as one lane-dense (Cp, bblk*HW) slab.  Each piece is
    # a whole number of 128-lane tiles, so the lane concat is essentially free.
    if bblk == 1:
        x = x_ref[0]
    else:
        x = jnp.concatenate([x_ref[b] for b in range(bblk)], axis=1)

    hh = hh_ref[...]
    ww = ww_ref[...]

    # im2col via lane rolls + boundary masks (replaces the padded-slice
    # relayouts).  Roll wrap-around across image boundaries lands exactly on
    # masked (out-of-bounds) columns, so one roll over the whole chunk is
    # correct for every image in it.
    pieces = []
    for kh in range(3):
        for kw in range(3):
            dh, dw = kh - 1, kw - 1
            s = dh * W + dw                                   # tap offset in flat HW
            t = x if s == 0 else pltpu.roll(x, shift=(-s) % N, axis=1)
            conds = []
            if dh < 0:
                conds.append(hh >= -dh)
            elif dh > 0:
                conds.append(hh < H - dh)
            if dw < 0:
                conds.append(ww >= -dw)
            elif dw > 0:
                conds.append(ww < W - dw)
            if conds:
                valid = conds[0]
                for c in conds[1:]:
                    valid = valid & c
                t = jnp.where(valid, t, jnp.zeros_like(t))
            pieces.append(t)
    patches = jnp.concatenate(pieces, axis=0)                 # (9*Cp, bblk*HW)

    # Single fused matmul: both branches, all images in the chunk, wide N.
    y = jnp.dot(wc_ref[...], patches,
                preferred_element_type=jnp.float32)           # (2*Cout, N) f32
    y = y + bc_ref[...]

    block_out = jnp.maximum(y[:Cout, :], 0.0)                 # block's own ReLU
    shortcut = y[Cout:, :]                                    # BN'd 1x1 conv
    out = jnp.maximum(block_out + shortcut, 0.0)              # residual + final ReLU

    # Lane-dense stores, one (Cout, HW) slab per image (tile-aligned slices).
    for bl in range(bblk):
        o_ref[bl] = out[:, bl * HW:(bl + 1) * HW].astype(o_ref.dtype)


def _auto_bblk(B, Cp, Cout, HW, in_itemsize, budget_bytes=6 * 2**20):
    """Largest divisor of B whose chunk working set fits `budget_bytes`, while
    keeping >= 2 grid steps so v7x's two TensorCores both get work."""
    best = 1
    for cand in range(1, B + 1):
        if B % cand:
            continue
        if B >= 2 and B // cand < 2:
            continue
        n = cand * HW
        need = ((2 * Cp + 3 * 9 * Cp) * n * in_itemsize      # 2x-buffered x + taps/patches
                + (2 + 3 * 2) * Cout * n * 4)                # 2x-buffered out + f32 y/epilogue
        if need <= budget_bytes:
            best = cand
    return best


def resblock_forward(x_nchw, w3_hwio, s3, b3, w1_io, s1, b1, *,
                     bblk=None, matmul_dtype=None):
    """x_nchw: (B, Cin, H, W). Returns (B, Cout, H, W)."""
    B, Cin, H, W = x_nchw.shape
    Cout = w3_hwio.shape[-1]
    HW = H * W
    out_dtype = x_nchw.dtype

    # Round Cin up to a multiple of 8 so the in-kernel sublane concat of the
    # 9 tap slabs stays tile-aligned (no-op when Cin % 8 == 0, as in real nets).
    Cp = ((Cin + 7) // 8) * 8
    x = x_nchw
    if Cp != Cin:
        x = jnp.pad(x, ((0, 0), (0, Cp - Cin), (0, 0), (0, 0)))
    x = x.reshape(B, Cp, HW)            # contiguous (free) reshape; NO spatial pad pass

    # Fold BN scales into conv weights and fuse both branches into one W.
    w3s = w3_hwio * s3.reshape(1, 1, 1, Cout)                  # (3,3,Cin,Cout)
    w_blk = jnp.transpose(w3s, (3, 0, 1, 2)).reshape(Cout, 9, Cin)
    w1s = w1_io * s1.reshape(1, Cout)                          # (Cin, Cout)
    w_sc = jnp.zeros((Cout, 9, Cin), x_nchw.dtype).at[:, 4, :].set(w1s.T)
    w_all = jnp.concatenate([w_blk, w_sc], axis=0)             # (2*Cout, 9, Cin)
    if Cp != Cin:
        w_all = jnp.pad(w_all, ((0, 0), (0, 0), (0, Cp - Cin)))
    wc = w_all.reshape(2 * Cout, 9 * Cp)                       # (2*Cout, 9*Cp)
    bc = jnp.concatenate([b3.reshape(-1), b1.reshape(-1)])
    bc = bc.reshape(2 * Cout, 1).astype(jnp.float32)

    # bf16 matmul operands (v6e/v7x): cast once in the wrapper; accumulation
    # and the epilogue stay f32 inside the kernel.
    if matmul_dtype is not None:
        x = x.astype(matmul_dtype)
        wc = wc.astype(matmul_dtype)
    in_itemsize = jnp.dtype(x.dtype).itemsize

    if bblk is None:
        bblk = _auto_bblk(B, Cp, Cout, HW, in_itemsize)
    assert B % bblk == 0, "bblk must divide batch"
    N = bblk * HW

    # Per-lane (h, w) indices for the boundary masks, precomputed on host
    # (avoids in-kernel vector integer div/mod).  Pattern repeats per image.
    p = np.arange(N) % HW
    hh = jnp.asarray((p // W).astype(np.int32).reshape(1, N))
    ww = jnp.asarray((p % W).astype(np.int32).reshape(1, N))

    kernel = partial(resblock_kernel, H=H, W=W, Cp=Cp, Cout=Cout, bblk=bblk)

    cost = pl.CostEstimate(
        flops=2 * B * (2 * Cout) * (9 * Cp) * HW,
        transcendentals=0,
        bytes_accessed=(x.size + wc.size) * in_itemsize
        + (bc.size + hh.size + ww.size + B * Cout * HW) * 4,
    )

    # Explicit scoped-VMEM limit once the working set outgrows the conservative
    # default (v5e's default scoped limit is only 16 MiB).
    per_step = ((2 * Cp + 3 * 9 * Cp) * N * in_itemsize
                + (2 + 3 * 2) * Cout * N * 4
                + wc.size * in_itemsize + bc.size * 4 + 2 * N * 4)
    vmem_limit = None
    if per_step > 12 * 2**20:
        vmem_limit = int(min(2 * per_step, 64 * 2**20))

    out_flat = pl.pallas_call(
        kernel,
        out_shape=jax.ShapeDtypeStruct((B, Cout, HW), out_dtype),
        grid=(B // bblk,),
        in_specs=[
            pl.BlockSpec((bblk, Cp, HW), lambda i: (i, 0, 0)),
            # TODO(synk): at real ResBlock widths verify in the MLIR dump that
            # these constant-index operands are not re-DMA'd per grid step.
            pl.BlockSpec((2 * Cout, 9 * Cp), lambda i: (0, 0)),
            pl.BlockSpec((2 * Cout, 1), lambda i: (0, 0)),
            pl.BlockSpec((1, N), lambda i: (0, 0)),
            pl.BlockSpec((1, N), lambda i: (0, 0)),
        ],
        out_specs=pl.BlockSpec((bblk, Cout, HW), lambda i: (i, 0, 0)),
        compiler_params=pltpu.CompilerParams(
            dimension_semantics=("parallel",),      # v7x: chunks split across 2 TCs
            vmem_limit_bytes=vmem_limit),
        cost_estimate=cost,
    )(x, wc, bc, hh, ww)

    # Contiguous (free) reshape: (B, Cout, H*W) -> NCHW.  No transposes needed.
    return out_flat.reshape(B, Cout, H, W)


def ref_forward(x_nchw, w3_hwio, s3, b3, w1_hwio, s1, b1):
    """Pure-JAX reference (lax conv) for correctness check."""
    x = jnp.transpose(x_nchw, (0, 2, 3, 1))
    dn = ("NHWC", "HWIO", "NHWC")
    y3 = jax.lax.conv_general_dilated(x, w3_hwio, (1, 1), "SAME",
                                      dimension_numbers=dn)
    y3 = jnp.maximum(y3 * s3.reshape(1, 1, 1, -1) + b3.reshape(1, 1, 1, -1), 0.0)
    y1 = jax.lax.conv_general_dilated(x, w1_hwio, (1, 1), "SAME",
                                      dimension_numbers=dn)
    y1 = y1 * s1.reshape(1, 1, 1, -1) + b1.reshape(1, 1, 1, -1)
    y = jnp.maximum(y3 + y1, 0.0)
    return jnp.transpose(y, (0, 3, 1, 2))


if __name__ == "__main__":
    B, Cin, H, W, Cout = 2, 4, 16, 16, 8
    eps = 1e-5

    key = jax.random.PRNGKey(0)
    ks = jax.random.split(key, 8)

    x_nchw = jax.random.normal(ks[0], (B, Cin, H, W), jnp.float32)

    # block branch params (Conv3x3 no-bias + BN gamma/beta; eval stats mean=0, var=1)
    w3_hwio = jax.random.normal(ks[1], (3, 3, Cin, Cout), jnp.float32) * 0.1
    gamma3 = 1.0 + 0.1 * jax.random.normal(ks[2], (Cout,), jnp.float32)
    beta3 = 0.1 * jax.random.normal(ks[3], (Cout,), jnp.float32)

    # shortcut params (Conv1x1 no-bias + BN gamma/beta)
    w1_io = jax.random.normal(ks[4], (Cin, Cout), jnp.float32) * 0.1
    gamma1 = 1.0 + 0.1 * jax.random.normal(ks[5], (Cout,), jnp.float32)
    beta1 = 0.1 * jax.random.normal(ks[6], (Cout,), jnp.float32)

    # fold eval-mode BN into per-channel scale/bias
    s3 = (gamma3 / jnp.sqrt(1.0 + eps)).reshape(1, Cout)
    b3 = beta3.reshape(1, Cout)
    s1 = (gamma1 / jnp.sqrt(1.0 + eps)).reshape(1, Cout)
    b1 = beta1.reshape(1, Cout)

    # Set matmul_dtype=jnp.bfloat16 on v6e/v7x for 2x MXU rate (loosen the
    # tolerance if checking that path); f32 here to match PyTorch exactly.
    out = resblock_forward(x_nchw, w3_hwio, s3, b3, w1_io, s1, b1,
                           bblk=None, matmul_dtype=None)
    out = jax.block_until_ready(out)

    ref = ref_forward(x_nchw, w3_hwio, s3, b3,
                      w1_io.reshape(1, 1, Cin, Cout), s1, b1)
    np.testing.assert_allclose(np.asarray(out), np.asarray(ref),
                               rtol=1e-4, atol=1e-4)

    print("KERNEL_OK")
</pallas_src>

<mosaic_0001>
module attributes {stable_mosaic.version = 11 : i64} {
  func.func @resblock_kernel(%arg0: i32, %arg1: memref<1x8x256xf32, #tpu.memory_space<vmem>>, %arg2: memref<16x72xf32, #tpu.memory_space<vmem>>, %arg3: memref<16x1xf32, #tpu.memory_space<vmem>>, %arg4: memref<1x256xi32, #tpu.memory_space<vmem>>, %arg5: memref<1x256xi32, #tpu.memory_space<vmem>>, %arg6: memref<1x8x256xf32, #tpu.memory_space<vmem>>) attributes {dimension_semantics = [#tpu.dimension_semantics<parallel>], iteration_bounds = array<i64: 2>, scalar_prefetch = 0 : i64, scratch_operands = 0 : i64, tpu.core_type = #tpu.core_type<tc>, window_params = [{transform_indices = @transform_0, window_bounds = array<i64: 1, 8, 256>}, {pipeline_mode = #tpu.pipeline_mode<synchronous>, transform_indices = @transform_1, window_bounds = array<i64: 16, 72>}, {pipeline_mode = #tpu.pipeline_mode<synchronous>, transform_indices = @transform_2, window_bounds = array<i64: 16, 1>}, {pipeline_mode = #tpu.pipeline_mode<synchronous>, transform_indices = @transform_3, window_bounds = array<i64: 1, 256>}, {pipeline_mode = #tpu.pipeline_mode<synchronous>, transform_indices = @transform_4, window_bounds = array<i64: 1, 256>}, {transform_indices = @transform_5, window_bounds = array<i64: 1, 8, 256>}]} {
    %c0 = arith.constant 0 : index
    %c0_0 = arith.constant 0 : index
    %c0_1 = arith.constant 0 : index
    %0 = vector.load %arg1[%c0, %c0_0, %c0_1] : memref<1x8x256xf32, #tpu.memory_space<vmem>>, vector<1x8x256xf32>
    %1 = vector.shape_cast %0 : vector<1x8x256xf32> to vector<8x256xf32>
    %c0_2 = arith.constant 0 : index
    %c0_3 = arith.constant 0 : index
    %2 = vector.load %arg4[%c0_2, %c0_3] : memref<1x256xi32, #tpu.memory_space<vmem>>, vector<1x256xi32>
    %c0_4 = arith.constant 0 : index
    %c0_5 = arith.constant 0 : index
    %3 = vector.load %arg5[%c0_4, %c0_5] : memref<1x256xi32, #tpu.memory_space<vmem>>, vector<1x256xi32>
    %c17_i32 = arith.constant 17 : i32
    %4 = tpu.dynamic_rotate %1 by %c17_i32 dim 1 : vector<8x256xf32>, i32 -> vector<8x256xf32>
    %c1_i32 = arith.constant 1 : i32
    %5 = vector.broadcast %c1_i32 : i32 to vector<1x256xi32>
    %6 = arith.cmpi sge, %2, %5 : vector<1x256xi32>
    %c1_i32_6 = arith.constant 1 : i32
    %7 = vector.broadcast %c1_i32_6 : i32 to vector<1x256xi32>
    %8 = arith.cmpi sge, %3, %7 : vector<1x256xi32>
    %9 = arith.andi %6, %8 : vector<1x256xi1>
    %cst = arith.constant 0.000000e+00 : f32
    %10 = vector.broadcast %cst : f32 to vector<8x256xf32>
    %11 = vector.shape_cast %9 : vector<1x256xi1> to vector<1x256xi1>
    %12 = vector.broadcast %11 : vector<1x256xi1> to vector<8x256xi1>
    %13 = arith.select %12, %4, %10 : vector<8x256xi1>, vector<8x256xf32>
    %c16_i32 = arith.constant 16 : i32
    %14 = tpu.dynamic_rotate %1 by %c16_i32 dim 1 : vector<8x256xf32>, i32 -> vector<8x256xf32>
    %c1_i32_7 = arith.constant 1 : i32
    %15 = vector.broadcast %c1_i32_7 : i32 to vector<1x256xi32>
    %16 = arith.cmpi sge, %2, %15 : vector<1x256xi32>
    %cst_8 = arith.constant 0.000000e+00 : f32
    %17 = vector.broadcast %cst_8 : f32 to vector<8x256xf32>
    %18 = vector.shape_cast %16 : vector<1x256xi1> to vector<1x256xi1>
    %19 = vector.broadcast %18 : vector<1x256xi1> to vector<8x256xi1>
    %20 = arith.select %19, %14, %17 : vector<8x256xi1>, vector<8x256xf32>
    %c15_i32 = arith.constant 15 : i32
    %21 = tpu.dynamic_rotate %1 by %c15_i32 dim 1 : vector<8x256xf32>, i32 -> vector<8x256xf32>
    %c1_i32_9 = arith.constant 1 : i32
    %22 = vector.broadcast %c1_i32_9 : i32 to vector<1x256xi32>
    %23 = arith.cmpi sge, %2, %22 : vector<1x256xi32>
    %c15_i32_10 = arith.constant 15 : i32
    %24 = vector.broadcast %c15_i32_10 : i32 to vector<1x256xi32>
    %25 = arith.cmpi slt, %3, %24 : vector<1x256xi32>
    %26 = arith.andi %23, %25 : vector<1x256xi1>
    %cst_11 = arith.constant 0.000000e+00 : f32
    %27 = vector.broadcast %cst_11 : f32 to vector<8x256xf32>
    %28 = vector.shape_cast %26 : vector<1x256xi1> to vector<1x256xi1>
    %29 = vector.broadcast %28 : vector<1x256xi1> to vector<8x256xi1>
    %30 = arith.select %29, %21, %27 : vector<8x256xi1>, vector<8x256xf32>
    %c1_i32_12 = arith.constant 1 : i32
    %31 = tpu.dynamic_rotate %1 by %c1_i32_12 dim 1 : vector<8x256xf32>, i32 -> vector<8x256xf32>
    %c1_i32_13 = arith.constant 1 : i32
    %32 = vector.broadcast %c1_i32_13 : i32 to vector<1x256xi32>
    %33 = arith.cmpi sge, %3, %32 : vector<1x256xi32>
    %cst_14 = arith.constant 0.000000e+00 : f32
    %34 = vector.broadcast %cst_14 : f32 to vector<8x256xf32>
    %35 = vector.shape_cast %33 : vector<1x256xi1> to vector<1x256xi1>
    %36 = vector.broadcast %35 : vector<1x256xi1> to vector<8x256xi1>
    %37 = arith.select %36, %31, %34 : vector<8x256xi1>, vector<8x256xf32>
    %c255_i32 = arith.constant 255 : i32
    %38 = tpu.dynamic_rotate %1 by %c255_i32 dim 1 : vector<8x256xf32>, i32 -> vector<8x256xf32>
    %c15_i32_15 = arith.constant 15 : i32
    %39 = vector.broadcast %c15_i32_15 : i32 to vector<1x256xi32>
    %40 = arith.cmpi slt, %3, %39 : vector<1x256xi32>
    %cst_16 = arith.constant 0.000000e+00 : f32
    %41 = vector.broadcast %cst_16 : f32 to vector<8x256xf32>
    %42 = vector.shape_cast %40 : vector<1x256xi1> to vector<1x256xi1>
    %43 = vector.broadcast %42 : vector<1x256xi1> to vector<8x256xi1>
    %44 = arith.select %43, %38, %41 : vector<8x256xi1>, vector<8x256xf32>
    %c241_i32 = arith.constant 241 : i32
    %45 = tpu.dynamic_rotate %1 by %c241_i32 dim 1 : vector<8x256xf32>, i32 -> vector<8x256xf32>
    %c15_i32_17 = arith.constant 15 : i32
    %46 = vector.broadcast %c15_i32_17 : i32 to vector<1x256xi32>
    %47 = arith.cmpi slt, %2, %46 : vector<1x256xi32>
    %c1_i32_18 = arith.constant 1 : i32
    %48 = vector.broadcast %c1_i32_18 : i32 to vector<1x256xi32>
    %49 = arith.cmpi sge, %3, %48 : vector<1x256xi32>
    %50 = arith.andi %47, %49 : vector<1x256xi1>
    %cst_19 = arith.constant 0.000000e+00 : f32
    %51 = vector.broadcast %cst_19 : f32 to vector<8x256xf32>
    %52 = vector.shape_cast %50 : vector<1x256xi1> to vector<1x256xi1>
    %53 = vector.broadcast %52 : vector<1x256xi1> to vector<8x256xi1>
    %54 = arith.select %53, %45, %51 : vector<8x256xi1>, vector<8x256xf32>
    %c240_i32 = arith.constant 240 : i32
    %55 = tpu.dynamic_rotate %1 by %c240_i32 dim 1 : vector<8x256xf32>, i32 -> vector<8x256xf32>
    %c15_i32_20 = arith.constant 15 : i32
    %56 = vector.broadcast %c15_i32_20 : i32 to vector<1x256xi32>
    %57 = arith.cmpi slt, %2, %56 : vector<1x256xi32>
    %cst_21 = arith.constant 0.000000e+00 : f32
    %58 = vector.broadcast %cst_21 : f32 to vector<8x256xf32>
    %59 = vector.shape_cast %57 : vector<1x256xi1> to vector<1x256xi1>
    %60 = vector.broadcast %59 : vector<1x256xi1> to vector<8x256xi1>
    %61 = arith.select %60, %55, %58 : vector<8x256xi1>, vector<8x256xf32>
    %c239_i32 = arith.constant 239 : i32
    %62 = tpu.dynamic_rotate %1 by %c239_i32 dim 1 : vector<8x256xf32>, i32 -> vector<8x256xf32>
    %c15_i32_22 = arith.constant 15 : i32
    %63 = vector.broadcast %c15_i32_22 : i32 to vector<1x256xi32>
    %64 = arith.cmpi slt, %2, %63 : vector<1x256xi32>
    %c15_i32_23 = arith.constant 15 : i32
    %65 = vector.broadcast %c15_i32_23 : i32 to vector<1x256xi32>
    %66 = arith.cmpi slt, %3, %65 : vector<1x256xi32>
    %67 = arith.andi %64, %66 : vector<1x256xi1>
    %cst_24 = arith.constant 0.000000e+00 : f32
    %68 = vector.broadcast %cst_24 : f32 to vector<8x256xf32>
    %69 = vector.shape_cast %67 : vector<1x256xi1> to vector<1x256xi1>
    %70 = vector.broadcast %69 : vector<1x256xi1> to vector<8x256xi1>
    %71 = arith.select %70, %62, %68 : vector<8x256xi1>, vector<8x256xf32>
    %72 = tpu.concatenate %13, %20, %30, %37, %1, %44, %54, %61, %71 in 0 : vector<8x256xf32>, vector<8x256xf32>, vector<8x256xf32>, vector<8x256xf32>, vector<8x256xf32>, vector<8x256xf32>, vector<8x256xf32>, vector<8x256xf32>, vector<8x256xf32> -> vector<72x256xf32>
    %c0_25 = arith.constant 0 : index
    %c0_26 = arith.constant 0 : index
    %73 = vector.load %arg2[%c0_25, %c0_26] : memref<16x72xf32, #tpu.memory_space<vmem>>, vector<16x72xf32>
    %cst_27 = arith.constant dense<0.000000e+00> : vector<16x256xf32>
    %74 = tpu.matmul %73, %72, %cst_27 {dimension_numbers = #tpu.dot_dimension_numbers<[1], [0], [0], [1], [0, 0, 1, 1], [], []>} : vector<16x72xf32>, vector<72x256xf32>, vector<16x256xf32> -> vector<16x256xf32>
    %c0_28 = arith.constant 0 : index
    %c0_29 = arith.constant 0 : index
    %75 = vector.load %arg3[%c0_28, %c0_29] : memref<16x1xf32, #tpu.memory_space<vmem>>, vector<16x1xf32>
    %76 = vector.broadcast %75 : vector<16x1xf32> to vector<16x256xf32>
    %77 = arith.addf %74, %76 : vector<16x256xf32>
    %78 = vector.extract_strided_slice %77 {offsets = [0, 0], sizes = [8, 256], strides = [1, 1]} : vector<16x256xf32> to vector<8x256xf32>
    %cst_30 = arith.constant 0.000000e+00 : f32
    %79 = vector.broadcast %cst_30 : f32 to vector<8x256xf32>
    %80 = arith.maximumf %78, %79 : vector<8x256xf32>
    %81 = vector.extract_strided_slice %77 {offsets = [8, 0], sizes = [8, 256], strides = [1, 1]} : vector<16x256xf32> to vector<8x256xf32>
    %82 = arith.addf %80, %81 : vector<8x256xf32>
    %cst_31 = arith.constant 0.000000e+00 : f32
    %83 = vector.broadcast %cst_31 : f32 to vector<8x256xf32>
    %84 = arith.maximumf %82, %83 : vector<8x256xf32>
    %c0_32 = arith.constant 0 : index
    %c0_33 = arith.constant 0 : index
    %c0_34 = arith.constant 0 : index
    %85 = vector.load %arg6[%c0_32, %c0_33, %c0_34] : memref<1x8x256xf32, #tpu.memory_space<vmem>>, vector<1x8x256xf32>
    %86 = vector.shape_cast %85 : vector<1x8x256xf32> to vector<8x256xf32>
    %87 = vector.shape_cast %84 : vector<8x256xf32> to vector<1x8x256xf32>
    tpu.vector_store %arg6[%c0_32, %c0_33, %c0_34], %87 {strides = array<i32>} : memref<1x8x256xf32, #tpu.memory_space<vmem>>, vector<1x8x256xf32>,
    return
  }
  func.func @transform_0(%arg0: i32) -> (i32, i32, i32) {
    %c0_i32 = arith.constant 0 : i32
    %c0_i32_0 = arith.constant 0 : i32
    %c0_i32_1 = arith.constant 0 : i32
    return %arg0, %c0_i32, %c0_i32_0 : i32, i32, i32
  }
  func.func @transform_1(%arg0: i32) -> (i32, i32) {
    %c0_i32 = arith.constant 0 : i32
    %c0_i32_0 = arith.constant 0 : i32
    %c0_i32_1 = arith.constant 0 : i32
    return %c0_i32, %c0_i32_0 : i32, i32
  }
  func.func @transform_2(%arg0: i32) -> (i32, i32) {
    %c0_i32 = arith.constant 0 : i32
    %c0_i32_0 = arith.constant 0 : i32
    %c0_i32_1 = arith.constant 0 : i32
    return %c0_i32, %c0_i32_0 : i32, i32
  }
  func.func @transform_3(%arg0: i32) -> (i32, i32) {
    %c0_i32 = arith.constant 0 : i32
    %c0_i32_0 = arith.constant 0 : i32
    %c0_i32_1 = arith.constant 0 : i32
    return %c0_i32, %c0_i32_0 : i32, i32
  }
  func.func @transform_4(%arg0: i32) -> (i32, i32) {
    %c0_i32 = arith.constant 0 : i32
    %c0_i32_0 = arith.constant 0 : i32
    %c0_i32_1 = arith.constant 0 : i32
    return %c0_i32, %c0_i32_0 : i32, i32
  }
  func.func @transform_5(%arg0: i32) -> (i32, i32, i32) {
    %c0_i32 = arith.constant 0 : i32
    %c0_i32_0 = arith.constant 0 : i32
    %c0_i32_1 = arith.constant 0 : i32
    return %arg0, %c0_i32, %c0_i32_0 : i32, i32, i32
  }
}

</mosaic_0001>

<llo_original>
// kernel: tpu_custom_call.1
$region0: #{tpu_custom_call.1}
  #allocation0 [shape = 'u32[]', space=smem, size = 0x4, offset = 0x4, fixed_abs, tag = 'smem constant byte address 0x4 - core index']
  #allocation1 [shape = 'u32[72,128]{1,0:T(1,128)}', space=vmem, size = 0x9000, scoped, tag = 'internal scratch']
  %s0 = inlined_call_operand.hbm [shape: f32[2,8,256], index: 0, kind: input, shape index: {}]
  %s1 = inlined_call_operand.vmem [shape: f32[16,72], index: 1, kind: input, shape index: {}]
  %s2 = inlined_call_operand.vmem [shape: f32[16,1], index: 2, kind: input, shape index: {}]
  %s3 = inlined_call_operand.vmem [shape: s32[1,256], index: 3, kind: input, shape index: {}]
  %s4 = inlined_call_operand.vmem [shape: s32[1,256], index: 4, kind: input, shape index: {}]
  %s5 = inlined_call_operand.hbm [shape: f32[2,8,256], index: 5, kind: output, shape index: {}]
  %s6 = sld [smem:[#allocation0]]
  $region57: #{tpu_custom_call.1} parent=0
    _
  %s8 = ssub.s32 1, %s6
  %s9 = scalar_select 0, %s8, %s6
  $region1: #{tpu_custom_call.1} parent=0
    #allocation2 [shape = 'u8[16384]{0}', space=vmem, size = 0x4000, scoped, tag = 'input window, operand 0']
    #allocation3 [shape = 's32[2]{0}', space=sflag, size = 0x8, scoped, tag = 'scoped memory for tpu_custom_call.1']
    #allocation4 [shape = 's32[2]{0}', space=sflag, size = 0x8, scoped, tag = 'scoped memory for tpu_custom_call.1']
    #allocation5 [shape = 'u8[16384]{0}', space=vmem, size = 0x4000, scoped, tag = 'output window, operand 0']
    %10 = vsyncpa [#allocation3], 0
    %s11 = scalar_lea.sflag [#allocation3], 1
    %12 = vsyncpa %s11, 0
    %13 = vsyncpa [#allocation4], 0
    %s14 = scalar_lea.sflag [#allocation4], 1
    %15 = vsyncpa %s14, 0
    loop: start=0, step=1, limit=4
    $region2: #{tpu_custom_call.1} parent=1 // loop_pre_header
      _
    $region3: #{tpu_custom_call.1} parent=1 // loop_header
      %s17 = sphi 0, %s21
      %p18 = scmp.ge.s32.totalorder %s17, 4
      %s27 = sphi 0, %s29
      %s30 = sphi 0, %s27
      %s31 = sphi 0, %s30
      %s47 = sphi 0, %s31
      %s51 = sphi 0, %s51
      %s53 = sphi 0, %s51
      %s54 = sphi 0, %s53
      %s68 = sphi 0, %s54
      %s72 = sphi 0, %s72
      %s74 = sphi 0, %s72
      %s75 = sphi 0, %s74
      %s89 = sphi 0, %s75
      %s93 = sphi 0, %s93
      %s95 = sphi 0, %s93
      %s96 = sphi 0, %s95
      %s110 = sphi 0, %s96
      %s114 = sphi 0, %s114
      %s116 = sphi 0, %s114
      %s117 = sphi 0, %s116
      %s131 = sphi 0, %s117
      %s137 = sphi 0, %s139
      %s140 = sphi 0, %s137
      %s141 = sphi 0, %s140
      %s157 = sphi 0, %s141
    $region4: #{tpu_custom_call.1} parent=1 // loop_header_branch
      %20 = sbr.rel (%p18) target = $region8
    $region5: #{tpu_custom_call.1} parent=1 // loop_body
      %s22 = ssub.s32 %s17, 1
      %s23 = ssub.s32 %s17, 2
      %s24 = sadd.s32 %s17, 1
      %s25 = ssub.s32 %s17, %s24
      %p26 = scmp.eq.s32.totalorder %s25, 0
      %s28 = sadd.s32 %s27, 1
      %s29 = scalar_select %p26, %s27, %s28
      %p32 = pneg %p26
      %p33 = scmp.eq.s32.totalorder %s17, 1
      %p34 = por %p32, %p33
      %p35 = scmp.ne.s32.totalorder %s27, %s30
      %p36 = scmp.eq.s32.totalorder %s17, 0
      %p37 = por %p35, %p36
      %p38 = scmp.ne.s32.totalorder %s27, %s30
      %p39 = scmp.eq.s32.totalorder %s22, 1
      %p40 = por %p38, %p39
      %p41 = scmp.ne.s32.totalorder %s30, %s31
      %p42 = scmp.eq.s32.totalorder %s22, 0
      %p43 = por %p41, %p42
      %p44 = scmp.ne.s32.totalorder %s30, %s31
      %p45 = scmp.eq.s32.totalorder %s23, 1
      %p46 = por %p44, %p45
      %p48 = scmp.ne.s32.totalorder %s31, %s47
      %p49 = scmp.eq.s32.totalorder %s23, 0
      %p50 = por %p48, %p49
      %s52 = sadd.s32 %s51, 1
      %p55 = scmp.eq.s32.totalorder %s17, 1
      %p56 = scmp.ne.s32.totalorder %s51, %s53
      %p57 = scmp.eq.s32.totalorder %s17, 0
      %p58 = por %p56, %p57
      %p59 = scmp.ne.s32.totalorder %s51, %s53
      %p60 = scmp.eq.s32.totalorder %s22, 1
      %p61 = por %p59, %p60
      %p62 = scmp.ne.s32.totalorder %s53, %s54
      %p63 = scmp.eq.s32.totalorder %s22, 0
      %p64 = por %p62, %p63
      %p65 = scmp.ne.s32.totalorder %s53, %s54
      %p66 = scmp.eq.s32.totalorder %s23, 1
      %p67 = por %p65, %p66
      %p69 = scmp.ne.s32.totalorder %s54, %s68
      %p70 = scmp.eq.s32.totalorder %s23, 0
      %p71 = por %p69, %p70
      %s73 = sadd.s32 %s72, 1
      %p76 = scmp.eq.s32.totalorder %s17, 1
      %p77 = scmp.ne.s32.totalorder %s72, %s74
      %p78 = scmp.eq.s32.totalorder %s17, 0
      %p79 = por %p77, %p78
      %p80 = scmp.ne.s32.totalorder %s72, %s74
      %p81 = scmp.eq.s32.totalorder %s22, 1
      %p82 = por %p80, %p81
      %p83 = scmp.ne.s32.totalorder %s74, %s75
      %p84 = scmp.eq.s32.totalorder %s22, 0
      %p85 = por %p83, %p84
      %p86 = scmp.ne.s32.totalorder %s74, %s75
      %p87 = scmp.eq.s32.totalorder %s23, 1
      %p88 = por %p86, %p87
      %p90 = scmp.ne.s32.totalorder %s75, %s89
      %p91 = scmp.eq.s32.totalorder %s23, 0
      %p92 = por %p90, %p91
      %s94 = sadd.s32 %s93, 1
      %p97 = scmp.eq.s32.totalorder %s17, 1
      %p98 = scmp.ne.s32.totalorder %s93, %s95
      %p99 = scmp.eq.s32.totalorder %s17, 0
      %p100 = por %p98, %p99
      %p101 = scmp.ne.s32.totalorder %s93, %s95
      %p102 = scmp.eq.s32.totalorder %s22, 1
      %p103 = por %p101, %p102
      %p104 = scmp.ne.s32.totalorder %s95, %s96
      %p105 = scmp.eq.s32.totalorder %s22, 0
      %p106 = por %p104, %p105
      %p107 = scmp.ne.s32.totalorder %s95, %s96
      %p108 = scmp.eq.s32.totalorder %s23, 1
      %p109 = por %p107, %p108
      %p111 = scmp.ne.s32.totalorder %s96, %s110
      %p112 = scmp.eq.s32.totalorder %s23, 0
      %p113 = por %p111, %p112
      %s115 = sadd.s32 %s114, 1
      %p118 = scmp.eq.s32.totalorder %s17, 1
      %p119 = scmp.ne.s32.totalorder %s114, %s116
      %p120 = scmp.eq.s32.totalorder %s17, 0
      %p121 = por %p119, %p120
      %p122 = scmp.ne.s32.totalorder %s114, %s116
      %p123 = scmp.eq.s32.totalorder %s22, 1
      %p124 = por %p122, %p123
      %p125 = scmp.ne.s32.totalorder %s116, %s117
      %p126 = scmp.eq.s32.totalorder %s22, 0
      %p127 = por %p125, %p126
      %p128 = scmp.ne.s32.totalorder %s116, %s117
      %p129 = scmp.eq.s32.totalorder %s23, 1
      %p130 = por %p128, %p129
      %p132 = scmp.ne.s32.totalorder %s117, %s131
      %p133 = scmp.eq.s32.totalorder %s23, 0
      %p134 = por %p132, %p133
      %s135 = ssub.s32 %s17, %s24
      %p136 = scmp.eq.s32.totalorder %s135, 0
      %s138 = sadd.s32 %s137, 1
      %s139 = scalar_select %p136, %s137, %s138
      %p142 = pneg %p136
      %p143 = scmp.eq.s32.totalorder %s17, 1
      %p144 = por %p142, %p143
      %p145 = scmp.ne.s32.totalorder %s137, %s140
      %p146 = scmp.eq.s32.totalorder %s17, 0
      %p147 = por %p145, %p146
      %p148 = scmp.ne.s32.totalorder %s137, %s140
      %p149 = scmp.eq.s32.totalorder %s22, 1
      %p150 = por %p148, %p149
      %p151 = scmp.ne.s32.totalorder %s140, %s141
      %p152 = scmp.eq.s32.totalorder %s22, 0
      %p153 = por %p151, %p152
      %p154 = scmp.ne.s32.totalorder %s140, %s141
      %p155 = scmp.eq.s32.totalorder %s23, 1
      %p156 = por %p154, %p155
      %p158 = scmp.ne.s32.totalorder %s141, %s157
      %p159 = scmp.eq.s32.totalorder %s23, 0
      %p160 = por %p158, %p159
      %p161 = scmp.le.s32.totalorder 1, %s17
      %p162 = scmp.lt.s32.totalorder %s17, 3
      %p163 = pnand %p161, %p162
      %p164 = pneg %p163
      // Predicated region
      $region9: #{tpu_custom_call.1} parent=5 // pred_check
        _
      $region10: #{tpu_custom_call.1} parent=5 // pred_check_branch
        %166 = sbr.rel (%p163) target = $region12
      $region11: #{tpu_custom_call.1} parent=5 // pred_region
        %s167 = ssub.s32 %s17, 1
        // Predicated region
        $region13: #{tpu_custom_call.1} parent=11 // pred_check
          %p168 = pneg %p64
        $region14: #{tpu_custom_call.1} parent=11 // pred_check_branch
          %170 = sbr.rel (%p168) target = $region16
        $region15: #{tpu_custom_call.1} parent=11 // pred_region
          _
        $region16: #{tpu_custom_call.1} parent=11 // pred_fallthru
          _
        // Predicated region
        $region17: #{tpu_custom_call.1} parent=11 // pred_check
          %p171 = pneg %p85
        $region18: #{tpu_custom_call.1} parent=11 // pred_check_branch
          %173 = sbr.rel (%p171) target = $region20
        $region19: #{tpu_custom_call.1} parent=11 // pred_region
          _
        $region20: #{tpu_custom_call.1} parent=11 // pred_fallthru
          _
        // Predicated region
        $region21: #{tpu_custom_call.1} parent=11 // pred_check
          %p174 = pneg %p106
        $region22: #{tpu_custom_call.1} parent=11 // pred_check_branch
          %176 = sbr.rel (%p174) target = $region24
        $region23: #{tpu_custom_call.1} parent=11 // pred_region
          _
        $region24: #{tpu_custom_call.1} parent=11 // pred_fallthru
          _
        // Predicated region
        $region25: #{tpu_custom_call.1} parent=11 // pred_check
          %p177 = pneg %p127
        $region26: #{tpu_custom_call.1} parent=11 // pred_check_branch
          %179 = sbr.rel (%p177) target = $region28
        $region27: #{tpu_custom_call.1} parent=11 // pred_region
          _
        $region28: #{tpu_custom_call.1} parent=11 // pred_fallthru
          _
      $region12: #{tpu_custom_call.1} parent=5 // pred_fallthru
        _
      %p180 = scmp.lt.s32.totalorder %s17, 2
      // Predicated region
      $region29: #{tpu_custom_call.1} parent=5 // pred_check
        %p181 = pneg %p180
      $region30: #{tpu_custom_call.1} parent=5 // pred_check_branch
        %183 = sbr.rel (%p181) target = $region32
      $region31: #{tpu_custom_call.1} parent=5 // pred_region
        // Predicated region
        $region33: #{tpu_custom_call.1} parent=31 // pred_check
          %p184 = pneg %p37
        $region34: #{tpu_custom_call.1} parent=31 // pred_check_branch
          %186 = sbr.rel (%p184) target = $region36
        $region35: #{tpu_custom_call.1} parent=31 // pred_region
          %s187 = sand.u32 %s27, 1
          %s188 = scalar_lea.sflag [#allocation3], %s187
          %s189 = sand.u32 %s27, 1
          %s190 = smul.addr %s189, 16
          %s191 = scalar_lea.vmem [#allocation2], %s190
          %193 = vsyncadd %s188, 0
          %s194 = smul.addr %s17, 2
          %s195 = smul.addr %s194, 8
          %s196 = scalar_lea.hbm %s0, %s195
          %s198 = sshll.u32 %s196, 4
          %s199 = int_to_ptr.hbm [resolvable:$true] %s198
          %s200 = sshll.u32 %s191, 4
          %s201 = int_to_ptr.vmem [resolvable:$true] %s200
          %203 = dma.hbm_to_vmem [thread:$0]  %s199, 256, %s201, %s188
        $region36: #{tpu_custom_call.1} parent=31 // pred_fallthru
          _
      $region32: #{tpu_custom_call.1} parent=5 // pred_fallthru
        _
      %p204 = scmp.le.s32.totalorder 1, %s17
      %p205 = scmp.lt.s32.totalorder %s17, 3
      %p206 = pnand %p204, %p205
      %p207 = pneg %p206
      // Predicated region
      $region37: #{tpu_custom_call.1} parent=5 // pred_check
        _
      $region38: #{tpu_custom_call.1} parent=5 // pred_check_branch
        %209 = sbr.rel (%p206) target = $region40
      $region39: #{tpu_custom_call.1} parent=5 // pred_region
        %s210 = ssub.s32 %s17, 1
        %s211 = sand.u32 %s30, 1
        %s212 = scalar_lea.sflag [#allocation3], %s211
        %s213 = sand.u32 %s30, 1
        %s214 = smul.addr %s213, 16
        %s215 = scalar_lea.vmem [#allocation2], %s214
        // Predicated region
        $region41: #{tpu_custom_call.1} parent=39 // pred_check
          %p216 = pneg %p43
        $region42: #{tpu_custom_call.1} parent=39 // pred_check_branch
          %218 = sbr.rel (%p216) target = $region44
        $region43: #{tpu_custom_call.1} parent=39 // pred_region
          %220 = dma.done %s212, 256
        $region44: #{tpu_custom_call.1} parent=39 // pred_fallthru
          _
        %s221 = sand.u32 %s30, 1
        %s222 = scalar_lea.sflag [#allocation3], %s221
        %s223 = sand.u32 %s30, 1
        %s224 = smul.addr %s223, 16
        %s225 = scalar_lea.vmem [#allocation2], %s224
        %p226 = pneg %p43
        %p227 = pneg %p40
        %p228 = pneg %p64
        %p229 = pneg %p61
        %p230 = pneg %p85
        %p231 = pneg %p82
        %p232 = pneg %p106
        %p233 = pneg %p103
        %p234 = pneg %p127
        %p235 = pneg %p124
        %p236 = pneg %p153
        %p237 = pneg %p150
        %s238 = sand.u32 %s140, 1
        %s239 = scalar_lea.sflag [#allocation4], %s238
        %s240 = sand.u32 %s140, 1
        %s241 = smul.addr %s240, 16
        %s242 = scalar_lea.vmem [#allocation5], %s241
        %v243 = vld [vmem:[%s215] sm:$0xff]
        %v244 = vld [vmem:[%s215 + $0x8] sm:$0xff]
        %v245 = vld [vmem:[%s3] sm:$0x3]
        %v246 = vld [vmem:[%s4] sm:$0x3]
        %247 = vrot.lane.b32.xlu0 %v243, 17
        %v248 = vpop.permute.xlu0 %247
        %249 = vrot.lane.b32.xlu0 %v244, 17
        %v250 = vpop.permute.xlu0 %249
        %v251 = vlaneseq
        %v252 = vand.u32 %v251, 127
        %vm253 = vcmp.lt.s32.totalorder %v252, 17
        %v254 = vsel %vm253, %v248, %v250
        %v255 = vsel %vm253, %v250, %v248
        %vm256 = vcmp.ge.s32.totalorder %v245, 1
        %vm257 = vcmp.ge.s32.totalorder %v246, 1
        %vm258 = vmand %vm256, %vm257
        %v259 = vsel %vm258, 1, 0
        %v260 = vperm.slane %v259, 0
        %v261 = vperm.slane %v259, 1
        %vm262 = vcmp.eq.s32.totalorder %v260, 1
        %vm263 = vcmp.eq.s32.totalorder %v261, 1
        %v264 = vsel %vm262, %v255, 0.0
        %v265 = vsel %vm263, %v254, 0.0
        %266 = vrot.lane.b32.xlu0 %v243, 16
        %v267 = vpop.permute.xlu0 %266
        %268 = vrot.lane.b32.xlu0 %v244, 16
        %v269 = vpop.permute.xlu0 %268
        %vm270 = vcmp.lt.s32.totalorder %v252, 16
        %v271 = vsel %vm270, %v267, %v269
        %v272 = vsel %vm270, %v269, %v267
        %v273 = vsel %vm256, 1, 0
        %v274 = vperm.slane %v273, 0
        %v275 = vperm.slane %v273, 1
        %vm276 = vcmp.eq.s32.totalorder %v274, 1
        %vm277 = vcmp.eq.s32.totalorder %v275, 1
        %v278 = vsel %vm276, %v272, 0.0
        %v279 = vsel %vm277, %v271, 0.0
        %280 = vrot.lane.b32.xlu0 %v243, 15
        %v281 = vpop.permute.xlu0 %280
        %282 = vrot.lane.b32.xlu0 %v244, 15
        %v283 = vpop.permute.xlu0 %282
        %vm284 = vcmp.lt.s32.totalorder %v252, 15
        %v285 = vsel %vm284, %v281, %v283
        %v286 = vsel %vm284, %v283, %v281
        %vm287 = vcmp.lt.s32.totalorder %v246, 15
        %vm288 = vmand %vm256, %vm287
        %v289 = vsel %vm288, 1, 0
        %v290 = vperm.slane %v289, 0
        %v291 = vperm.slane %v289, 1
        %vm292 = vcmp.eq.s32.totalorder %v290, 1
        %vm293 = vcmp.eq.s32.totalorder %v291, 1
        %v294 = vsel %vm292, %v286, 0.0
        %v295 = vsel %vm293, %v285, 0.0
        %296 = vrot.lane.b32.xlu0 %v243, 1
        %v297 = vpop.permute.xlu0 %296
        %298 = vrot.lane.b32.xlu0 %v244, 1
        %v299 = vpop.permute.xlu0 %298
        %vm300 = vcmp.lt.s32.totalorder %v252, 1
        %v301 = vsel %vm300, %v297, %v299
        %v302 = vsel %vm300, %v299, %v297
        %v303 = vsel %vm257, 1, 0
        %v304 = vperm.slane %v303, 0
        %v305 = vperm.slane %v303, 1
        %vm306 = vcmp.eq.s32.totalorder %v304, 1
        %vm307 = vcmp.eq.s32.totalorder %v305, 1
        %v308 = vsel %vm306, %v302, 0.0
        %v309 = vsel %vm307, %v301, 0.0
        %310 = vrot.lane.b32.xlu0 %v243, 127
        %v311 = vpop.permute.xlu0 %310
        %312 = vrot.lane.b32.xlu0 %v244, 127
        %v313 = vpop.permute.xlu0 %312
        %vm314 = vcmp.lt.s32.totalorder %v252, 127
        %v315 = vsel %vm314, %v311, %v313
        %v316 = vsel %vm314, %v313, %v311
        %v317 = vsel %vm287, 1, 0
        %v318 = vperm.slane %v317, 0
        %v319 = vperm.slane %v317, 1
        %vm320 = vcmp.eq.s32.totalorder %v318, 1
        %vm321 = vcmp.eq.s32.totalorder %v319, 1
        %v322 = vsel %vm320, %v315, 0.0
        %v323 = vsel %vm321, %v316, 0.0
        %324 = vrot.lane.b32.xlu0 %v243, 113
        %v325 = vpop.permute.xlu0 %324
        %326 = vrot.lane.b32.xlu0 %v244, 113
        %v327 = vpop.permute.xlu0 %326
        %vm328 = vcmp.lt.s32.totalorder %v252, 113
        %v329 = vsel %vm328, %v325, %v327
        %v330 = vsel %vm328, %v327, %v325
        %vm331 = vcmp.lt.s32.totalorder %v245, 15
        %vm332 = vmand %vm331, %vm257
        %v333 = vsel %vm332, 1, 0
        %v334 = vperm.slane %v333, 0
        %v335 = vperm.slane %v333, 1
        %vm336 = vcmp.eq.s32.totalorder %v334, 1
        %vm337 = vcmp.eq.s32.totalorder %v335, 1
        %v338 = vsel %vm336, %v329, 0.0
        %v339 = vsel %vm337, %v330, 0.0
        %340 = vrot.lane.b32.xlu0 %v243, 112
        %v341 = vpop.permute.xlu0 %340
        %342 = vrot.lane.b32.xlu0 %v244, 112
        %v343 = vpop.permute.xlu0 %342
        %vm344 = vcmp.lt.s32.totalorder %v252, 112
        %v345 = vsel %vm344, %v341, %v343
        %v346 = vsel %vm344, %v343, %v341
        %v347 = vsel %vm331, 1, 0
        %v348 = vperm.slane %v347, 0
        %v349 = vperm.slane %v347, 1
        %vm350 = vcmp.eq.s32.totalorder %v348, 1
        %vm351 = vcmp.eq.s32.totalorder %v349, 1
        %v352 = vsel %vm350, %v345, 0.0
        %v353 = vsel %vm351, %v346, 0.0
        %354 = vrot.lane.b32.xlu0 %v243, 111
        %v355 = vpop.permute.xlu0 %354
        %356 = vrot.lane.b32.xlu0 %v244, 111
        %v357 = vpop.permute.xlu0 %356
        %vm358 = vcmp.lt.s32.totalorder %v252, 111
        %v359 = vsel %vm358, %v355, %v357
        %v360 = vsel %vm358, %v357, %v355
        %vm361 = vmand %vm331, %vm287
        %v362 = vsel %vm361, 1, 0
        %v363 = vperm.slane %v362, 0
        %v364 = vperm.slane %v362, 1
        %vm365 = vcmp.eq.s32.totalorder %v363, 1
        %vm366 = vcmp.eq.s32.totalorder %v364, 1
        %v367 = vsel %vm365, %v359, 0.0
        %v368 = vsel %vm366, %v360, 0.0
        %v369 = vld [vmem:[%s1] sm:$0xff]
        %v370 = vld [vmem:[%s1 + $0x8] sm:$0xff]
        %v371 = vld [vmem:[%s2] sm:$0xff]
        %v372 = vld [vmem:[%s2 + $0x8] sm:$0xff]
        %374 = vset.pattern.permute.xlu0 0
        %375 = vperm.xlu0 %374, %v371
        %v376 = vpop.permute.xlu0 %375
        %379 = vset.pattern.permute.xlu0 0
        %380 = vperm.xlu0 %379, %v372
        %v381 = vpop.permute.xlu0 %380
        %vm383 = vcmask 588800
        %v385 = vsel %vm383, %v369, 0
        %v388 = vsel %vm383, %v370, 0
        %390 = vmatpush.msra.mxu0 0.0
        %391 = vmatpush.msra.mxu0 0.0
        %392 = vmatpush.msra.mxu0 0.0
        %393 = vmatpush.msra.mxu0 0.0
        %394 = vmatpush.msra.mxu0 0.0
        %395 = vmatpush.msra.mxu0 0.0
        %396 = vmatpush.msra.mxu0 0.0
        %397 = vmatpush.msra.mxu0 %v367
        %398 = vmatpush.msra.mxu0 %v352
        %399 = vmatpush.msra.mxu0 %v338
        %400 = vmatpush.msra.mxu0 %v322
        %401 = vmatpush.msra.mxu0 %v243
        %402 = vmatpush.msra.mxu0 %v308
        %403 = vmatpush.msra.mxu0 %v294
        %404 = vmatpush.msra.mxu0 %v278
        %405 = vmatpush.msra.mxu0 %v264
        %406 = vmatmul.f32.gmra.mxu0 %v385
        %v407 = vpop.f32.mrf.mxu0
        %v408 = vadd.f32 %v376, %v407
        %409 = vmatmul.f32.gmra.mxu0 %v388
        %v410 = vpop.f32.mrf.mxu0
        %v411 = vadd.f32 %v381, %v410
        %412 = vdwg.mxu0
        %413 = vmatpush.msra.mxu0 0.0
        %414 = vmatpush.msra.mxu0 0.0
        %415 = vmatpush.msra.mxu0 0.0
        %416 = vmatpush.msra.mxu0 0.0
        %417 = vmatpush.msra.mxu0 0.0
        %418 = vmatpush.msra.mxu0 0.0
        %419 = vmatpush.msra.mxu0 0.0
        %420 = vmatpush.msra.mxu0 %v368
        %421 = vmatpush.msra.mxu0 %v353
        %422 = vmatpush.msra.mxu0 %v339
        %423 = vmatpush.msra.mxu0 %v323
        %424 = vmatpush.msra.mxu0 %v244
        %425 = vmatpush.msra.mxu0 %v309
        %426 = vmatpush.msra.mxu0 %v295
        %427 = vmatpush.msra.mxu0 %v279
        %428 = vmatpush.msra.mxu0 %v265
        %429 = vmatmul.f32.gmra.mxu0 %v385
        %v430 = vpop.f32.mrf.mxu0
        %v431 = vadd.f32 %v376, %v430
        %432 = vmatmul.f32.gmra.mxu0 %v388
        %v433 = vpop.f32.mrf.mxu0
        %v434 = vadd.f32 %v381, %v433
        %435 = vdwg.mxu0
        %v436 = vmax.f32 %v408, 0.0
        %v437 = vmax.f32 %v431, 0.0
        %v438 = vadd.f32 %v436, %v411
        %v439 = vadd.f32 %v437, %v434
        %v440 = vmax.f32 %v438, 0.0
        %v441 = vmax.f32 %v439, 0.0
        %442 = vst [vmem:[%s242] sm:$0xff] %v440
        %443 = vst [vmem:[%s242 + $0x8] sm:$0xff] %v441
        %s444 = sand.u32 %s140, 1
        %s445 = scalar_lea.sflag [#allocation4], %s444
        %s446 = sand.u32 %s140, 1
        %s447 = smul.addr %s446, 16
        %s448 = scalar_lea.vmem [#allocation5], %s447
        // Predicated region
        $region45: #{tpu_custom_call.1} parent=39 // pred_check
          %p449 = pneg %p150
        $region46: #{tpu_custom_call.1} parent=39 // pred_check_branch
          %451 = sbr.rel (%p449) target = $region48
        $region47: #{tpu_custom_call.1} parent=39 // pred_region
          %453 = vsyncadd %s445, 0
          %s454 = smul.addr %s22, 2
          %s455 = smul.addr %s454, 8
          %s456 = scalar_lea.hbm %s5, %s455
          %s458 = sshll.u32 %s448, 4
          %s459 = int_to_ptr.vmem [resolvable:$true] %s458
          %s460 = sshll.u32 %s456, 4
          %s461 = int_to_ptr.hbm [resolvable:$true] %s460
          %463 = dma.vmem_to_hbm [thread:$0]  %s459, 256, %s461, %s445
        $region48: #{tpu_custom_call.1} parent=39 // pred_fallthru
          _
      $region40: #{tpu_custom_call.1} parent=5 // pred_fallthru
        _
      %p464 = scmp.le.s32.totalorder 2, %s17
      // Predicated region
      $region49: #{tpu_custom_call.1} parent=5 // pred_check
        %p465 = pneg %p464
      $region50: #{tpu_custom_call.1} parent=5 // pred_check_branch
        %467 = sbr.rel (%p465) target = $region52
      $region51: #{tpu_custom_call.1} parent=5 // pred_region
        %s468 = ssub.s32 %s17, 2
        // Predicated region
        $region53: #{tpu_custom_call.1} parent=51 // pred_check
          %p469 = pneg %p156
        $region54: #{tpu_custom_call.1} parent=51 // pred_check_branch
          %471 = sbr.rel (%p469) target = $region56
        $region55: #{tpu_custom_call.1} parent=51 // pred_region
          %s472 = sand.u32 %s141, 1
          %s473 = scalar_lea.sflag [#allocation4], %s472
          %s474 = sand.u32 %s141, 1
          %s475 = smul.addr %s474, 16
          %s476 = scalar_lea.vmem [#allocation5], %s475
          %478 = dma.done %s473, 256
        $region56: #{tpu_custom_call.1} parent=51 // pred_fallthru
          _
      $region52: #{tpu_custom_call.1} parent=5 // pred_fallthru
        _
    $region6: #{tpu_custom_call.1} parent=1 // loop_footer
      %s21 = sadd.s32 1, %s17
    $region7: #{tpu_custom_call.1} parent=1 // loop_footer_branch
      %16 = sbr.rel target = $region3
    $region8: #{tpu_custom_call.1} parent=1 // loop_exit
      _
    %479 = vsyncpa [#allocation3], 1
    %s480 = scalar_lea.sflag [#allocation3], 1
    %481 = vsyncpa %s480, 1
    %482 = vsyncpa [#allocation4], 1
    %s483 = scalar_lea.sflag [#allocation4], 1
    %484 = vsyncpa %s483, 1

</llo_original>
